<compile_context>
chip_gen: v6e
topology: v6e:2x2x1
jax: 0.10.0
libtpu: 0.0.40
codegen_flags: <defaults>
</compile_context>

<pallas_src>
import math
import functools

import jax
import jax.numpy as jnp
from jax.experimental import pallas as pl
from jax.experimental.pallas import tpu as pltpu


# ------------------------------------------------------------------
# helpers
# ------------------------------------------------------------------
def _round_up(x, m):
    return ((x + m - 1) // m) * m


def _tile(dim, target, align):
    """Largest block <= target that divides `dim` and is a multiple of
    `align`; falls back to the full dimension (always a legal block)."""
    if dim <= target:
        return dim
    t = (target // align) * align
    while t >= align:
        if dim % t == 0:
            return t
        t -= align
    return dim


def _row_tiling(dim, target, pad_to):
    """Pick a row (second-minor) tile.  When no clean divisor exists, pad the
    dimension on the host instead of silently falling back to one giant
    block (which would kill pipelining and can blow VMEM)."""
    if dim <= target:
        return dim, dim
    t = _tile(dim, target, 8)
    if t != dim and t >= 128:
        return t, dim
    padded = _round_up(dim, pad_to)
    return pad_to, padded


def _vmem_limit(est_bytes):
    # generous (compile-safe) but always below v7x's 64 MiB physical VMEM
    return int(min(max(4 * est_bytes + (16 << 20), 32 << 20), 48 << 20))


# ------------------------------------------------------------------
# Tiled, pipelined linear:  y = x @ wt + b
#   x : (M, K) bf16    wt : (K, N) bf16    b : (1, N) f32   ->  (M, N)
# ------------------------------------------------------------------
def _linear_kernel(x_ref, wt_ref, b_ref, o_ref, acc_ref):
    kk = pl.program_id(2)
    prod = jnp.dot(x_ref[...], wt_ref[...], preferred_element_type=jnp.float32)

    @pl.when(kk == 0)
    def _():
        acc_ref[...] = prod          # init with first partial (no zero pass)

    @pl.when(kk > 0)
    def _():
        acc_ref[...] += prod

    @pl.when(kk == pl.num_programs(2) - 1)
    def _():
        o_ref[...] = (acc_ref[...] + b_ref[...]).astype(o_ref.dtype)


def _linear(x, wt, b, out_dtype):
    M, K = x.shape
    N = wt.shape[1]
    tm, Mp = _row_tiling(M, 512, 256)
    if Mp != M:
        x = jnp.pad(x, ((0, Mp - M), (0, 0)))
    tn = _tile(N, 512, 128)
    tk = _tile(K, 512, 128)
    grid = (Mp // tm, N // tn, K // tk)

    out_isz = jnp.dtype(out_dtype).itemsize
    est = (2 * (tm * tk * 2 + tk * tn * 2 + tn * 4 + tm * tn * out_isz)
           + tm * tn * 4)
    cost = pl.CostEstimate(
        flops=2 * Mp * N * K,
        transcendentals=0,
        bytes_accessed=(Mp * K + K * N) * 2 + Mp * N * out_isz)

    out = pl.pallas_call(
        _linear_kernel,
        out_shape=jax.ShapeDtypeStruct((Mp, N), out_dtype),
        grid=grid,
        in_specs=[
            pl.BlockSpec((tm, tk), lambda i, j, k: (i, k)),
            pl.BlockSpec((tk, tn), lambda i, j, k: (k, j)),
            pl.BlockSpec((1, tn), lambda i, j, k: (0, j)),
        ],
        out_specs=pl.BlockSpec((tm, tn), lambda i, j, k: (i, j)),
        scratch_shapes=[pltpu.VMEM((tm, tn), jnp.float32)],
        compiler_params=pltpu.CompilerParams(
            dimension_semantics=("parallel", "parallel", "arbitrary"),
            vmem_limit_bytes=_vmem_limit(est)),
        cost_estimate=cost,
    )(x, wt, b)
    if Mp != M:
        out = out[:M]
    return out


# ------------------------------------------------------------------
# Flash-style attention: grid = (batch, T1-tiles, T2-tiles), all heads.
#   q : (B, T1, *)   k, v : (B, T2, *)   mask : (Hm, T1, T2) int8
#   out : (B, T1, F) bf16   (merged-head, lane-dense)
# Online max/sum across T2 tiles; mask applied to the numerator only
# (post-softmax masked_fill semantics of the reference).
# ------------------------------------------------------------------
def _attention_kernel(q_ref, k_ref, v_ref, m_ref, o_ref,
                      acc_sc, m_sc, l_sc, *, n_head, d_k, mask_heads):
    t2_idx = pl.program_id(2)

    @pl.when(t2_idx == 0)
    def _():
        m_sc[...] = jnp.full_like(m_sc, -jnp.inf)
        l_sc[...] = jnp.zeros_like(l_sc)
        acc_sc[...] = jnp.zeros_like(acc_sc)

    for h in range(n_head):
        lo = h * d_k
        qh = q_ref[0, :, lo:lo + d_k]                       # (tq, d_k) bf16
        kh = k_ref[0, :, lo:lo + d_k]                       # (t2, d_k) bf16
        vh = v_ref[0, :, lo:lo + d_k]                       # (t2, d_k) bf16
        # q @ k^T on the MXU; 1/sqrt(d_k) already folded into the q weights
        s = jax.lax.dot_general(
            qh, kh, dimension_numbers=(((1,), (1,)), ((), ())),
            preferred_element_type=jnp.float32)             # (tq, t2) f32

        # online softmax statistics over T2 (UNMASKED scores -> denominator)
        m_old = m_sc[h]                                     # (tq, 1)
        m_new = jnp.maximum(m_old, jnp.max(s, axis=-1, keepdims=True))
        alpha = jnp.exp(m_old - m_new)                      # (tq, 1)
        e = jnp.exp(s - m_new)                              # (tq, t2)
        l_sc[h] = alpha * l_sc[h] + jnp.sum(e, axis=-1, keepdims=True)
        m_sc[h] = m_new

        # masked_fill(mask == 0, 0) happens AFTER normalization in the
        # reference => mask the numerator only.  Mask's leading dim aligns
        # with the HEAD axis (reference broadcast quirk).
        mh = m_ref[h if mask_heads > 1 else 0].astype(jnp.float32)
        p = (e * mh).astype(v_ref.dtype)                    # bf16 for the MXU
        acc_sc[h] = alpha * acc_sc[h] + jnp.dot(
            p, vh, preferred_element_type=jnp.float32)      # (tq, d_k)

    @pl.when(t2_idx == pl.num_programs(2) - 1)
    def _():
        for h in range(n_head):
            lo = h * d_k
            inv_l = pl.reciprocal(l_sc[h], approx=True)
            o_ref[0, :, lo:lo + d_k] = (acc_sc[h] * inv_l).astype(o_ref.dtype)


def _attention(q_arr, k_arr, v_arr, mask, n_head, d_k,
               blk_q=0, blk_k=0, blk_v=0):
    B, T1 = q_arr.shape[0], q_arr.shape[1]
    T2 = k_arr.shape[1]
    F = n_head * d_k

    mask_heads = mask.shape[0]
    assert mask_heads in (1, n_head), (
        "reference masked_fill broadcast aligns mask's leading dim with heads")
    mask_i8 = (mask != 0).astype(jnp.int8)

    tq, T1p = _row_tiling(T1, 256, 256)
    if T1p != T1:
        q_arr = jnp.pad(q_arr, ((0, 0), (0, T1p - T1), (0, 0)))
        mask_i8 = jnp.pad(mask_i8, ((0, 0), (0, T1p - T1), (0, 0)),
                          constant_values=1)
    t2 = _tile(T2, 512, 128)           # 128-aligned or full T2 (see TODO)

    grid = (B, T1p // tq, T2 // t2)
    kernel = functools.partial(_attention_kernel, n_head=n_head, d_k=d_k,
                               mask_heads=mask_heads)

    est = (2 * tq * F * 2 + 2 * 2 * t2 * F * 2 + 2 * mask_heads * tq * t2
           + 2 * tq * F * 2 + n_head * tq * d_k * 4
           + 2 * n_head * tq * 128 * 4 + 6 * tq * t2 * 4)
    cost = pl.CostEstimate(
        flops=4 * B * n_head * T1p * T2 * d_k,
        transcendentals=B * n_head * T1p * T2,
        bytes_accessed=(2 * B * T1p * F * 2
                        + 2 * B * (T1p // tq) * T2 * F * 2
                        + B * mask_heads * T1p * T2))

    out = pl.pallas_call(
        kernel,
        out_shape=jax.ShapeDtypeStruct((B, T1p, F), jnp.bfloat16),
        grid=grid,
        in_specs=[
            pl.BlockSpec((1, tq, F), lambda b, i, j: (b, i, blk_q)),
            pl.BlockSpec((1, t2, F), lambda b, i, j: (b, j, blk_k)),
            pl.BlockSpec((1, t2, F), lambda b, i, j: (b, j, blk_v)),
            pl.BlockSpec((mask_heads, tq, t2), lambda b, i, j: (0, i, j)),
        ],
        out_specs=pl.BlockSpec((1, tq, F), lambda b, i, j: (b, i, 0)),
        scratch_shapes=[
            pltpu.VMEM((n_head, tq, d_k), jnp.float32),   # ctx accumulator
            pltpu.VMEM((n_head, tq, 1), jnp.float32),     # running max
            pltpu.VMEM((n_head, tq, 1), jnp.float32),     # running denom
        ],
        compiler_params=pltpu.CompilerParams(
            dimension_semantics=("parallel", "parallel", "arbitrary"),
            vmem_limit_bytes=_vmem_limit(est)),
        cost_estimate=cost,
    )(q_arr, k_arr, v_arr, mask_i8)
    if T1p != T1:
        out = out[:, :T1]
    return out


# ------------------------------------------------------------------
# Module wrapper
# ------------------------------------------------------------------
class MultiHeadedAttentionPallas:
    def __init__(self, n_head, n_feat, dropout_rate, key):
        assert n_feat % n_head == 0
        self.d_k = n_feat // n_head
        self.h = n_head
        self.n_feat = n_feat
        self.dropout_rate = dropout_rate  # 0.0 -> identity
        # TODO(synk): training-mode dropout (p > 0) is not implemented.

        bound = 1.0 / math.sqrt(n_feat)
        keys = jax.random.split(key, 8)

        def u(k, shape):
            return jax.random.uniform(k, shape, jnp.float32, -bound, bound)

        # PyTorch nn.Linear layout: weight (out, in), bias (out,)  (f32 masters)
        self.w_q, self.b_q = u(keys[0], (n_feat, n_feat)), u(keys[1], (n_feat,))
        self.w_k, self.b_k = u(keys[2], (n_feat, n_feat)), u(keys[3], (n_feat,))
        self.w_v, self.b_v = u(keys[4], (n_feat, n_feat)), u(keys[5], (n_feat,))
        self.w_o, self.b_o = u(keys[6], (n_feat, n_feat)), u(keys[7], (n_feat,))

        # Kernel-side parameters, built once:
        #  pre-transposed (in, out), bf16, 1/sqrt(d_k) folded into q, and a
        #  column-concatenated (F, 3F) QKV weight for fused self-attention.
        scale = 1.0 / math.sqrt(self.d_k)
        wt_q = (self.w_q.T * scale).astype(jnp.bfloat16)
        wt_k = self.w_k.T.astype(jnp.bfloat16)
        wt_v = self.w_v.T.astype(jnp.bfloat16)
        b_q_scaled = self.b_q * scale
        self.wt_q, self.wt_k, self.wt_v = wt_q, wt_k, wt_v
        self.b_q2 = b_q_scaled.reshape(1, n_feat)
        self.b_k2 = self.b_k.reshape(1, n_feat)
        self.b_v2 = self.b_v.reshape(1, n_feat)
        self.wt_qkv = jnp.concatenate([wt_q, wt_k, wt_v], axis=1)      # (F,3F)
        self.b_qkv = jnp.concatenate(
            [b_q_scaled, self.b_k, self.b_v]).reshape(1, 3 * n_feat)   # (1,3F)
        self.wt_o = self.w_o.T.astype(jnp.bfloat16)
        self.b_o2 = self.b_o.reshape(1, n_feat)

    def __call__(self, query, key, value, mask):
        if mask is None:
            raise NotImplementedError("mask=None path not implemented")
        B, T1, F = query.shape
        T2 = key.shape[1]
        H, d_k = self.h, self.d_k

        if query is key and query is value:
            # True self-attention: one (M, 3F) projection, input streamed once.
            x = query.reshape(B * T1, F).astype(jnp.bfloat16)
            qkv = _linear(x, self.wt_qkv, self.b_qkv, jnp.bfloat16)
            qkv = qkv.reshape(B, T1, 3 * F)
            if F % 128 == 0:
                # Hand the fused buffer to attention three times; the
                # BlockSpecs select the q/k/v column blocks (no HBM copies).
                ctx = _attention(qkv, qkv, qkv, mask, H, d_k, 0, 1, 2)
            else:
                ctx = _attention(qkv[..., :F], qkv[..., F:2 * F],
                                 qkv[..., 2 * F:], mask, H, d_k)
        else:
            q = _linear(query.reshape(B * T1, F).astype(jnp.bfloat16),
                        self.wt_q, self.b_q2, jnp.bfloat16).reshape(B, T1, F)
            k = _linear(key.reshape(B * T2, F).astype(jnp.bfloat16),
                        self.wt_k, self.b_k2, jnp.bfloat16).reshape(B, T2, F)
            v = _linear(value.reshape(B * T2, F).astype(jnp.bfloat16),
                        self.wt_v, self.b_v2, jnp.bfloat16).reshape(B, T2, F)
            ctx = _attention(q, k, v, mask, H, d_k)

        out = _linear(ctx.reshape(B * T1, F), self.wt_o, self.b_o2, jnp.float32)
        return out.reshape(B, T1, F)


# ------------------------------------------------------------------
# Pure-JAX reference (mirrors the PyTorch forward exactly, f32 weights)
# ------------------------------------------------------------------
def reference(mha, query, key, value, mask):
    B, T1, F = query.shape
    T2 = key.shape[1]
    H, d_k = mha.h, mha.d_k
    q = (query @ mha.w_q.T + mha.b_q).reshape(B, T1, H, d_k).transpose(0, 2, 1, 3)
    k = (key @ mha.w_k.T + mha.b_k).reshape(B, T2, H, d_k).transpose(0, 2, 1, 3)
    v = (value @ mha.w_v.T + mha.b_v).reshape(B, T2, H, d_k).transpose(0, 2, 1, 3)
    scores = jnp.einsum("bhqd,bhkd->bhqk", q, k) / math.sqrt(d_k)
    attn = jax.nn.softmax(scores, axis=-1)
    mask_b = jnp.broadcast_to((mask == 0)[None, ...], scores.shape)
    attn = jnp.where(mask_b, 0.0, attn)
    x = jnp.einsum("bhqk,bhkd->bhqd", attn, v)
    x = x.transpose(0, 2, 1, 3).reshape(B, T1, H * d_k)
    return x @ mha.w_o.T + mha.b_o


# ------------------------------------------------------------------
if __name__ == "__main__":
    # NOTE: the reference PyTorch masked_fill broadcast (mask (B,T1,T2) vs
    # scores (B,H,T1,T2)) only type-checks when B == H (or B == 1); use B == H.
    B, T, T2c, n_feat, n_head = 2, 8, 16, 128, 2
    dropout_rate = 0.0

    root = jax.random.PRNGKey(0)
    k_params, k_x, k_q, k_k, k_v, k_m1, k_m2 = jax.random.split(root, 7)

    mha = MultiHeadedAttentionPallas(n_head, n_feat, dropout_rate, k_params)

    # --- case 1: true self-attention (fused QKV path) --------------------
    x = jax.random.normal(k_x, (B, T, n_feat), jnp.float32)
    mask1 = (jax.random.uniform(k_m1, (B, T, T)) > 0.3).astype(jnp.float32)
    out1 = jax.block_until_ready(mha(x, x, x, mask1))
    ref1 = reference(mha, x, x, x, mask1)
    assert out1.shape == (B, T, n_feat)
    assert jnp.allclose(out1, ref1, atol=3e-2, rtol=3e-2), "self-attn mismatch"

    # --- case 2: cross-attention (separate projection path) --------------
    query = jax.random.normal(k_q, (B, T, n_feat), jnp.float32)
    key = jax.random.normal(k_k, (B, T2c, n_feat), jnp.float32)
    value = jax.random.normal(k_v, (B, T2c, n_feat), jnp.float32)
    mask2 = (jax.random.uniform(k_m2, (B, T, T2c)) > 0.3).astype(jnp.float32)
    out2 = jax.block_until_ready(mha(query, key, value, mask2))
    ref2 = reference(mha, query, key, value, mask2)
    assert out2.shape == (B, T, n_feat)
    assert jnp.allclose(out2, ref2, atol=3e-2, rtol=3e-2), "cross-attn mismatch"

    print("KERNEL_OK")
</pallas_src>

<mosaic_0001>
module attributes {stable_mosaic.version = 11 : i64} {
  func.func @_linear_kernel(%arg0: i32, %arg1: i32, %arg2: i32, %arg3: memref<16x128xbf16, #tpu.memory_space<vmem>>, %arg4: memref<128x384xbf16, #tpu.memory_space<vmem>>, %arg5: memref<1x384xf32, #tpu.memory_space<vmem>>, %arg6: memref<16x384xbf16, #tpu.memory_space<vmem>>, %arg7: memref<16x384xf32, #tpu.memory_space<vmem>>) attributes {dimension_semantics = [#tpu.dimension_semantics<parallel>, #tpu.dimension_semantics<parallel>, #tpu.dimension_semantics<arbitrary>], iteration_bounds = array<i64: 1, 1, 1>, scalar_prefetch = 0 : i64, scratch_operands = 1 : i64, tpu.core_type = #tpu.core_type<tc>, window_params = [{transform_indices = @transform_0, window_bounds = array<i64: 16, 128>}, {transform_indices = @transform_1, window_bounds = array<i64: 128, 384>}, {transform_indices = @transform_2, window_bounds = array<i64: 1, 384>}, {transform_indices = @transform_3, window_bounds = array<i64: 16, 384>}]} {
    %c0 = arith.constant 0 : index
    %c0_0 = arith.constant 0 : index
    %0 = vector.load %arg3[%c0, %c0_0] : memref<16x128xbf16, #tpu.memory_space<vmem>>, vector<16x128xbf16>
    %c0_1 = arith.constant 0 : index
    %c0_2 = arith.constant 0 : index
    %1 = vector.load %arg4[%c0_1, %c0_2] : memref<128x384xbf16, #tpu.memory_space<vmem>>, vector<128x384xbf16>
    %cst = arith.constant dense<0.000000e+00> : vector<16x384xf32>
    %2 = tpu.matmul %0, %1, %cst {dimension_numbers = #tpu.dot_dimension_numbers<[1], [0], [0], [1], [0, 0, 1, 1], [], []>} : vector<16x128xbf16>, vector<128x384xbf16>, vector<16x384xf32> -> vector<16x384xf32>
    %c0_i32 = arith.constant 0 : i32
    %3 = arith.cmpi eq, %arg2, %c0_i32 : i32
    %4 = arith.extui %3 : i1 to i32
    %c0_i32_3 = arith.constant 0 : i32
    %5 = arith.cmpi ne, %4, %c0_i32_3 : i32
    scf.if %5 {
      %c0_8 = arith.constant 0 : index
      %c0_9 = arith.constant 0 : index
      %12 = vector.load %arg7[%c0_8, %c0_9] : memref<16x384xf32, #tpu.memory_space<vmem>>, vector<16x384xf32>
      tpu.vector_store %arg7[%c0_8, %c0_9], %2 {strides = array<i32>} : memref<16x384xf32, #tpu.memory_space<vmem>>, vector<16x384xf32>,
    } else {
    }
    %c0_i32_4 = arith.constant 0 : i32
    %6 = arith.cmpi sgt, %arg2, %c0_i32_4 : i32
    %7 = arith.extui %6 : i1 to i32
    %c0_i32_5 = arith.constant 0 : i32
    %8 = arith.cmpi ne, %7, %c0_i32_5 : i32
    scf.if %8 {
      %c0_8 = arith.constant 0 : index
      %c0_9 = arith.constant 0 : index
      %12 = vector.load %arg7[%c0_8, %c0_9] : memref<16x384xf32, #tpu.memory_space<vmem>>, vector<16x384xf32>
      %13 = arith.addf %12, %2 : vector<16x384xf32>
      %c0_10 = arith.constant 0 : index
      %c0_11 = arith.constant 0 : index
      %14 = vector.load %arg7[%c0_10, %c0_11] : memref<16x384xf32, #tpu.memory_space<vmem>>, vector<16x384xf32>
      tpu.vector_store %arg7[%c0_10, %c0_11], %13 {strides = array<i32>} : memref<16x384xf32, #tpu.memory_space<vmem>>, vector<16x384xf32>,
    } else {
    }
    %c0_i32_6 = arith.constant 0 : i32
    %9 = arith.cmpi eq, %arg2, %c0_i32_6 : i32
    %10 = arith.extui %9 : i1 to i32
    %c0_i32_7 = arith.constant 0 : i32
    %11 = arith.cmpi ne, %10, %c0_i32_7 : i32
    scf.if %11 {
      %c0_8 = arith.constant 0 : index
      %c0_9 = arith.constant 0 : index
      %12 = vector.load %arg7[%c0_8, %c0_9] : memref<16x384xf32, #tpu.memory_space<vmem>>, vector<16x384xf32>
      %c0_10 = arith.constant 0 : index
      %c0_11 = arith.constant 0 : index
      %13 = vector.load %arg5[%c0_10, %c0_11] : memref<1x384xf32, #tpu.memory_space<vmem>>, vector<1x384xf32>
      %14 = vector.broadcast %13 : vector<1x384xf32> to vector<16x384xf32>
      %15 = arith.addf %12, %14 : vector<16x384xf32>
      %16 = arith.truncf %15 : vector<16x384xf32> to vector<16x384xbf16>
      %c0_12 = arith.constant 0 : index
      %c0_13 = arith.constant 0 : index
      %17 = vector.load %arg6[%c0_12, %c0_13] : memref<16x384xbf16, #tpu.memory_space<vmem>>, vector<16x384xbf16>
      tpu.vector_store %arg6[%c0_12, %c0_13], %16 {strides = array<i32>} : memref<16x384xbf16, #tpu.memory_space<vmem>>, vector<16x384xbf16>,
    } else {
    }
    return
  }
  func.func @transform_0(%arg0: i32, %arg1: i32, %arg2: i32) -> (i32, i32) {
    %c0_i32 = arith.constant 0 : i32
    return %arg0, %arg2 : i32, i32
  }
  func.func @transform_1(%arg0: i32, %arg1: i32, %arg2: i32) -> (i32, i32) {
    %c0_i32 = arith.constant 0 : i32
    return %arg2, %arg1 : i32, i32
  }
  func.func @transform_2(%arg0: i32, %arg1: i32, %arg2: i32) -> (i32, i32) {
    %c0_i32 = arith.constant 0 : i32
    %c0_i32_0 = arith.constant 0 : i32
    return %c0_i32, %arg1 : i32, i32
  }
  func.func @transform_3(%arg0: i32, %arg1: i32, %arg2: i32) -> (i32, i32) {
    %c0_i32 = arith.constant 0 : i32
    return %arg0, %arg1 : i32, i32
  }
}

</mosaic_0001>

<llo_original>
// kernel: tpu_custom_call.1
$region0: #{tpu_custom_call.1}
  #allocation0 [shape = 'u32[]', space=smem, size = 0x4, offset = 0x4, fixed_abs, tag = 'smem constant byte address 0x4 - core index']
  #allocation1 [shape = 'u32[144,128]{1,0:T(1,128)}', space=vmem, size = 0x12000, scoped, tag = 'internal scratch']
  #allocation2 [shape = 'f32[16,384]{1,0:T(8,128)}', space=vmem, size = 0x6000, scoped, tag = 'scratch operand']
  %s0 = inlined_call_operand.hbm [shape: bf16[16,128], index: 0, kind: input, shape index: {}]
  %s1 = inlined_call_operand.hbm [shape: bf16[128,384], index: 1, kind: input, shape index: {}]
  %s2 = inlined_call_operand.vmem [shape: f32[1,384], index: 2, kind: input, shape index: {}]
  %s3 = inlined_call_operand.hbm [shape: bf16[16,384], index: 3, kind: output, shape index: {}]
  %s4 = sld [smem:[#allocation0]]
  $region42: #{tpu_custom_call.1} parent=0
    _
  %s6 = ssub.s32 1, %s4
  %s7 = scalar_select 0, %s6, %s4
  $region1: #{tpu_custom_call.1} parent=0
    #allocation3 [shape = 'u8[4096]{0}', space=vmem, size = 0x1000, scoped, tag = 'input window, operand 0, single buffered']
    #allocation4 [shape = 's32[1]{0}', space=sflag, size = 0x4, scoped, tag = 'scoped memory for tpu_custom_call.1']
    #allocation5 [shape = 's32[1]{0}', space=sflag, size = 0x4, scoped, tag = 'scoped memory for tpu_custom_call.1']
    #allocation6 [shape = 'u8[98304]{0}', space=vmem, size = 0x18000, scoped, tag = 'input window, operand 1, single buffered']
    #allocation7 [shape = 's32[1]{0}', space=sflag, size = 0x4, scoped, tag = 'scoped memory for tpu_custom_call.1']
    #allocation8 [shape = 'u8[12288]{0}', space=vmem, size = 0x3000, scoped, tag = 'output window, operand 0, single buffered']
    %8 = vsyncpa [#allocation4], 0
    %9 = vsyncpa [#allocation7], 0
    %10 = vsyncpa [#allocation5], 0
    // Predicated region
    $region2: #{tpu_custom_call.1} parent=1 // pred_check
      _
    $region3: #{tpu_custom_call.1} parent=1 // pred_check_branch
      %12 = sbr.rel (0) target = $region5
    $region4: #{tpu_custom_call.1} parent=1 // pred_region
      %s14 = ssub.s32 128, 128
      %15 = vsyncadd [#allocation4], %s14
      %s16 = sshll.u32 [#allocation3], 4
      %s17 = int_to_ptr.vmem [resolvable:$true] %s16
      %22 = dma.hbm_to_vmem [thread:$0]  %s0, 128, %s17, [#allocation4], 64, 64, 4
    $region5: #{tpu_custom_call.1} parent=1 // pred_fallthru
      _
    // Predicated region
    $region6: #{tpu_custom_call.1} parent=1 // pred_check
      _
    $region7: #{tpu_custom_call.1} parent=1 // pred_check_branch
      %24 = sbr.rel (0) target = $region9
    $region8: #{tpu_custom_call.1} parent=1 // pred_region
      %s26 = ssub.s32 3072, 3072
      %27 = vsyncadd [#allocation7], %s26
      %s28 = sshll.u32 [#allocation6], 4
      %s29 = int_to_ptr.vmem [resolvable:$true] %s28
      %34 = dma.hbm_to_vmem [thread:$0]  %s1, 3072, %s29, [#allocation7], 192, 192, 12
    $region9: #{tpu_custom_call.1} parent=1 // pred_fallthru
      _
    // Predicated region
    $region10: #{tpu_custom_call.1} parent=1 // pred_check
      _
    $region11: #{tpu_custom_call.1} parent=1 // pred_check_branch
      %36 = sbr.rel (0) target = $region13
    $region12: #{tpu_custom_call.1} parent=1 // pred_region
      _
    $region13: #{tpu_custom_call.1} parent=1 // pred_fallthru
      _
    // Predicated region
    $region14: #{tpu_custom_call.1} parent=1 // pred_check
      _
    $region15: #{tpu_custom_call.1} parent=1 // pred_check_branch
      %38 = sbr.rel (0) target = $region17
    $region16: #{tpu_custom_call.1} parent=1 // pred_region
      %39 = dma.done [#allocation4], 128
    $region17: #{tpu_custom_call.1} parent=1 // pred_fallthru
      _
    // Predicated region
    $region18: #{tpu_custom_call.1} parent=1 // pred_check
      _
    $region19: #{tpu_custom_call.1} parent=1 // pred_check_branch
      %41 = sbr.rel (0) target = $region21
    $region20: #{tpu_custom_call.1} parent=1 // pred_region
      %42 = dma.done [#allocation7], 3072
    $region21: #{tpu_custom_call.1} parent=1 // pred_fallthru
      _
    %v44 = vld [vmem:[#allocation3] sm:$0xf]
    %v45 = vld [vmem:[#allocation3 + $0x4] sm:$0xf]
    %v46 = vld [vmem:[#allocation6] sm:$0xff]
    %v47 = vld [vmem:[#allocation6 + $0x8] sm:$0xf]
    %v48 = vld [vmem:[#allocation6 + $0xc] sm:$0xff]
    %v49 = vld [vmem:[#allocation6 + $0x14] sm:$0xf]
    %v50 = vld [vmem:[#allocation6 + $0x18] sm:$0xff]
    %v51 = vld [vmem:[#allocation6 + $0x20] sm:$0xf]
    %v52 = vld [vmem:[#allocation6 + $0x24] sm:$0xff]
    %v53 = vld [vmem:[#allocation6 + $0x2c] sm:$0xf]
    %v54 = vld [vmem:[#allocation6 + $0x30] sm:$0xff]
    %v55 = vld [vmem:[#allocation6 + $0x38] sm:$0xf]
    %v56 = vld [vmem:[#allocation6 + $0x3c] sm:$0xff]
    %v57 = vld [vmem:[#allocation6 + $0x44] sm:$0xf]
    %v58 = vld [vmem:[#allocation6 + $0x48] sm:$0xff]
    %v59 = vld [vmem:[#allocation6 + $0x50] sm:$0xf]
    %v60 = vld [vmem:[#allocation6 + $0x54] sm:$0xff]
    %v61 = vld [vmem:[#allocation6 + $0x5c] sm:$0xf]
    %v62 = vld [vmem:[#allocation6 + $0x60] sm:$0xff]
    %v63 = vld [vmem:[#allocation6 + $0x68] sm:$0xf]
    %v64 = vld [vmem:[#allocation6 + $0x6c] sm:$0xff]
    %v65 = vld [vmem:[#allocation6 + $0x74] sm:$0xf]
    %v66 = vld [vmem:[#allocation6 + $0x78] sm:$0xff]
    %v67 = vld [vmem:[#allocation6 + $0x80] sm:$0xf]
    %v68 = vld [vmem:[#allocation6 + $0x84] sm:$0xff]
    %v69 = vld [vmem:[#allocation6 + $0x8c] sm:$0xf]
    %v70 = vld [vmem:[#allocation6 + $0x90] sm:$0xff]
    %v71 = vld [vmem:[#allocation6 + $0x98] sm:$0xf]
    %v72 = vld [vmem:[#allocation6 + $0x9c] sm:$0xff]
    %v73 = vld [vmem:[#allocation6 + $0xa4] sm:$0xf]
    %v74 = vld [vmem:[#allocation6 + $0xa8] sm:$0xff]
    %v75 = vld [vmem:[#allocation6 + $0xb0] sm:$0xf]
    %v76 = vld [vmem:[#allocation6 + $0xb4] sm:$0xff]
    %v77 = vld [vmem:[#allocation6 + $0xbc] sm:$0xf]
    %v80 = vunpack.c.l.b16 %v44
    %v81 = vunpack.c.l.b16 %v45
    %v82 = vpack.c.b16 %v81, %v80
    %v116 = vunpack.c.l.b16 %v46
    %v117 = vunpack.c.h.b16 %v46
    %v118 = vunpack.c.l.b16 %v47
    %v119 = vunpack.c.l.b16 %v48
    %v120 = vunpack.c.h.b16 %v48
    %v121 = vunpack.c.l.b16 %v49
    %v122 = vunpack.c.l.b16 %v50
    %v123 = vunpack.c.h.b16 %v50
    %v124 = vunpack.c.l.b16 %v51
    %v125 = vunpack.c.l.b16 %v52
    %v126 = vunpack.c.h.b16 %v52
    %v127 = vunpack.c.l.b16 %v53
    %v128 = vunpack.c.l.b16 %v54
    %v129 = vunpack.c.h.b16 %v54
    %v130 = vunpack.c.l.b16 %v55
    %v131 = vunpack.c.l.b16 %v56
    %v132 = vunpack.c.h.b16 %v56
    %v133 = vunpack.c.l.b16 %v57
    %v134 = vunpack.c.l.b16 %v58
    %v135 = vunpack.c.h.b16 %v58
    %v136 = vunpack.c.l.b16 %v59
    %v137 = vunpack.c.l.b16 %v60
    %v138 = vunpack.c.h.b16 %v60
    %v139 = vunpack.c.l.b16 %v61
    %v140 = vunpack.c.l.b16 %v62
    %v141 = vunpack.c.h.b16 %v62
    %v142 = vunpack.c.l.b16 %v63
    %v143 = vunpack.c.l.b16 %v64
    %v144 = vunpack.c.h.b16 %v64
    %v145 = vunpack.c.l.b16 %v65
    %v146 = vunpack.c.l.b16 %v66
    %v147 = vunpack.c.h.b16 %v66
    %v148 = vunpack.c.l.b16 %v67
    %v149 = vunpack.c.l.b16 %v68
    %v150 = vunpack.c.h.b16 %v68
    %v151 = vunpack.c.l.b16 %v69
    %v152 = vunpack.c.l.b16 %v70
    %v153 = vunpack.c.h.b16 %v70
    %v154 = vunpack.c.l.b16 %v71
    %v155 = vunpack.c.l.b16 %v72
    %v156 = vunpack.c.h.b16 %v72
    %v157 = vunpack.c.l.b16 %v73
    %v158 = vunpack.c.l.b16 %v74
    %v159 = vunpack.c.h.b16 %v74
    %v160 = vunpack.c.l.b16 %v75
    %v161 = vunpack.c.l.b16 %v76
    %v162 = vunpack.c.h.b16 %v76
    %v163 = vunpack.c.l.b16 %v77
    %v164 = vpack.c.b16 %v119, %v116
    %v165 = vpack.c.b16 %v120, %v117
    %v166 = vpack.c.b16 %v121, %v118
    %v167 = vpack.c.b16 %v125, %v122
    %v168 = vpack.c.b16 %v126, %v123
    %v169 = vpack.c.b16 %v127, %v124
    %v170 = vpack.c.b16 %v131, %v128
    %v171 = vpack.c.b16 %v132, %v129
    %v172 = vpack.c.b16 %v133, %v130
    %v173 = vpack.c.b16 %v137, %v134
    %v174 = vpack.c.b16 %v138, %v135
    %v175 = vpack.c.b16 %v139, %v136
    %v176 = vpack.c.b16 %v143, %v140
    %v177 = vpack.c.b16 %v144, %v141
    %v178 = vpack.c.b16 %v145, %v142
    %v179 = vpack.c.b16 %v149, %v146
    %v180 = vpack.c.b16 %v150, %v147
    %v181 = vpack.c.b16 %v151, %v148
    %v182 = vpack.c.b16 %v155, %v152
    %v183 = vpack.c.b16 %v156, %v153
    %v184 = vpack.c.b16 %v157, %v154
    %v185 = vpack.c.b16 %v161, %v158
    %v186 = vpack.c.b16 %v162, %v159
    %v187 = vpack.c.b16 %v163, %v160
    %212 = vmatprep.subr.bf16.mxu0 %v186
    %213 = vmatpush1.bf16.msra.mxu0 %v185
    %214 = vmatprep.subr.bf16.mxu0 %v183
    %215 = vmatpush1.bf16.msra.mxu0 %v182
    %216 = vmatprep.subr.bf16.mxu0 %v180
    %217 = vmatpush1.bf16.msra.mxu0 %v179
    %218 = vmatprep.subr.bf16.mxu0 %v177
    %219 = vmatpush1.bf16.msra.mxu0 %v176
    %220 = vmatprep.subr.bf16.mxu0 %v174
    %221 = vmatpush1.bf16.msra.mxu0 %v173
    %222 = vmatprep.subr.bf16.mxu0 %v171
    %223 = vmatpush1.bf16.msra.mxu0 %v170
    %224 = vmatprep.subr.bf16.mxu0 %v168
    %225 = vmatpush1.bf16.msra.mxu0 %v167
    %226 = vmatprep.subr.bf16.mxu0 %v165
    %227 = vmatpush1.bf16.msra.mxu0 %v164
    %228 = vmatprep.subr.bf16.mxu0 0
    %229 = vmatpush2.bf16.msra.mxu0 0
    %230 = vmatprep.subr.bf16.mxu0 0
    %231 = vmatpush2.bf16.msra.mxu0 0
    %232 = vmatprep.subr.bf16.mxu0 0
    %233 = vmatpush2.bf16.msra.mxu0 0
    %234 = vmatprep.subr.bf16.mxu0 0
    %235 = vmatpush2.bf16.msra.mxu0 0
    %236 = vmatprep.subr.bf16.mxu0 0
    %237 = vmatpush2.bf16.msra.mxu0 0
    %238 = vmatprep.subr.bf16.mxu0 0
    %239 = vmatpush2.bf16.msra.mxu0 0
    %240 = vmatprep.subr.bf16.mxu0 0
    %241 = vmatpush2.bf16.msra.mxu0 0
    %242 = vmatprep.subr.bf16.mxu0 0
    %243 = vmatpush2.bf16.msra.mxu0 0
    %244 = vmatprep.mubr.bf16.mxu0 0
    %245 = vmatmul.mubr.bf16.gmra.mxu0 %v82
    %v246 = vpop.f32.mrf.mxu0
    %v247 = vadd.f32 0.0, %v246
    %v248 = vpop.f32.mrf.mxu0
    %v249 = vadd.f32 0.0, %v248
    %v250 = vpop.f32.mrf.mxu0
    %v251 = vadd.f32 0.0, %v250
    %v252 = vpop.f32.mrf.mxu0
    %v253 = vadd.f32 0.0, %v252
    %254 = vdwg.mxu0
    %255 = vmatprep.subr.bf16.mxu0 0
    %256 = vmatpush1.bf16.msra.mxu0 %v187
    %257 = vmatprep.subr.bf16.mxu0 0
    %258 = vmatpush1.bf16.msra.mxu0 %v184
    %259 = vmatprep.subr.bf16.mxu0 0
    %260 = vmatpush1.bf16.msra.mxu0 %v181
    %261 = vmatprep.subr.bf16.mxu0 0
    %262 = vmatpush1.bf16.msra.mxu0 %v178
    %263 = vmatprep.subr.bf16.mxu0 0
    %264 = vmatpush1.bf16.msra.mxu0 %v175
    %265 = vmatprep.subr.bf16.mxu0 0
    %266 = vmatpush1.bf16.msra.mxu0 %v172
    %267 = vmatprep.subr.bf16.mxu0 0
    %268 = vmatpush1.bf16.msra.mxu0 %v169
    %269 = vmatprep.subr.bf16.mxu0 0
    %270 = vmatpush1.bf16.msra.mxu0 %v166
    %271 = vmatprep.subr.bf16.mxu0 0
    %272 = vmatpush2.bf16.msra.mxu0 0
    %273 = vmatprep.subr.bf16.mxu0 0
    %274 = vmatpush2.bf16.msra.mxu0 0
    %275 = vmatprep.subr.bf16.mxu0 0
    %276 = vmatpush2.bf16.msra.mxu0 0
    %277 = vmatprep.subr.bf16.mxu0 0
    %278 = vmatpush2.bf16.msra.mxu0 0
    %279 = vmatprep.subr.bf16.mxu0 0
    %280 = vmatpush2.bf16.msra.mxu0 0
    %281 = vmatprep.subr.bf16.mxu0 0
    %282 = vmatpush2.bf16.msra.mxu0 0
    %283 = vmatprep.subr.bf16.mxu0 0
    %284 = vmatpush2.bf16.msra.mxu0 0
    %285 = vmatprep.subr.bf16.mxu0 0
    %286 = vmatpush2.bf16.msra.mxu0 0
    %287 = vmatprep.mubr.bf16.mxu0 0
    %288 = vmatmul.mubr.bf16.gmra.mxu0 %v82
    %v289 = vpop.f32.mrf.mxu0
    %v290 = vadd.f32 0.0, %v289
    %v291 = vpop.f32.mrf.mxu0
    %v292 = vpop.f32.mrf.mxu0
    %v293 = vadd.f32 0.0, %v292
    %v294 = vpop.f32.mrf.mxu0
    %295 = vdwg.mxu0
    %p296 = scmp.eq.s32.totalorder 0, 0
    // Predicated region
    $region22: #{tpu_custom_call.1} parent=1 // pred_check
      %p297 = pneg %p296
    $region23: #{tpu_custom_call.1} parent=1 // pred_check_branch
      %299 = sbr.rel (%p297) target = $region25
    $region24: #{tpu_custom_call.1} parent=1 // pred_region
      %300 = vst [vmem:[#allocation2] sm:$0xff] %v247
      %301 = vst [vmem:[#allocation2 + $0x8] sm:$0xff] %v249
      %302 = vst [vmem:[#allocation2 + $0x10] sm:$0xff] %v290
      %303 = vst [vmem:[#allocation2 + $0x18] sm:$0xff] %v251
      %304 = vst [vmem:[#allocation2 + $0x20] sm:$0xff] %v253
      %305 = vst [vmem:[#allocation2 + $0x28] sm:$0xff] %v293
    $region25: #{tpu_custom_call.1} parent=1 // pred_fallthru
      _
    %p306 = scmp.gt.s32.totalorder 0, 0
    // Predicated region
    $region26: #{tpu_custom_call.1} parent=1 // pred_check
      %p307 = pneg %p306
    $region27: #{tpu_custom_call.1} parent=1 // pred_check_branch
      %309 = sbr.rel (%p307) target = $region29
    $region28: #{tpu_custom_call.1} parent=1 // pred_region
      %v310 = vld [vmem:[#allocation2] sm:$0xff]
      %v311 = vld [vmem:[#allocation2 + $0x8] sm:$0xff]
      %v312 = vld [vmem:[#allocation2 + $0x10] sm:$0xff]
      %v313 = vld [vmem:[#allocation2 + $0x18] sm:$0xff]
      %v314 = vld [vmem:[#allocation2 + $0x20] sm:$0xff]
      %v315 = vld [vmem:[#allocation2 + $0x28] sm:$0xff]
      %v316 = vadd.f32 %v310, %v247
      %v317 = vadd.f32 %v311, %v249
      %v318 = vadd.f32 %v312, %v290
      %v319 = vadd.f32 %v313, %v251
      %v320 = vadd.f32 %v314, %v253
      %v321 = vadd.f32 %v315, %v293
      %322 = vst [vmem:[#allocation2] sm:$0xff] %v316
      %323 = vst [vmem:[#allocation2 + $0x8] sm:$0xff] %v317
      %324 = vst [vmem:[#allocation2 + $0x10] sm:$0xff] %v318
      %325 = vst [vmem:[#allocation2 + $0x18] sm:$0xff] %v319
      %326 = vst [vmem:[#allocation2 + $0x20] sm:$0xff] %v320
      %327 = vst [vmem:[#allocation2 + $0x28] sm:$0xff] %v321
    $region29: #{tpu_custom_call.1} parent=1 // pred_fallthru
      _
    // Predicated region
    $region30: #{tpu_custom_call.1} parent=1 // pred_check
      %p328 = pneg %p296
    $region31: #{tpu_custom_call.1} parent=1 // pred_check_branch
      %330 = sbr.rel (%p328) target = $region33
    $region32: #{tpu_custom_call.1} parent=1 // pred_region
      %v331 = vld [vmem:[#allocation2] sm:$0xff]
      %v332 = vld [vmem:[#allocation2 + $0x8] sm:$0xff]
      %v333 = vld [vmem:[#allocation2 + $0x10] sm:$0xff]
      %v334 = vld [vmem:[#allocation2 + $0x18] sm:$0xff]
      %v335 = vld [vmem:[#allocation2 + $0x20] sm:$0xff]
      %v336 = vld [vmem:[#allocation2 + $0x28] sm:$0xff]
      %v337 = vld [vmem:[%s2] sm:$0x7]
      %v339 = vlaneseq
      %v340 = vshrl.u32 %v339, 7
      %v341 = vsub.s32 0, %v340
      %v342 = vrot.slane %v337, %v341
      %v343 = vlaneseq
      %v344 = vshrl.u32 %v343, 7
      %v345 = vsub.s32 1, %v344
      %v346 = vrot.slane %v337, %v345
      %v347 = vlaneseq
      %v348 = vshrl.u32 %v347, 7
      %v349 = vsub.s32 2, %v348
      %v350 = vrot.slane %v337, %v349
      %v354 = vadd.f32 %v331, %v342
      %v355 = vadd.f32 %v332, %v346
      %v356 = vadd.f32 %v333, %v350
      %v357 = vadd.f32 %v334, %v342
      %v358 = vadd.f32 %v335, %v346
      %v359 = vadd.f32 %v336, %v350
      %v360 = vpack.c.bf16 %v357, %v354
      %v361 = vpack.c.bf16 %v358, %v355
      %v362 = vpack.c.bf16 %v359, %v356
      %v366 = vunpack.c.l.b16 %v360
      %v367 = vunpack.c.l.b16 %v361
      %v368 = vunpack.c.l.b16 %v362
      %v369 = vunpack.c.h.b16 %v360
      %v370 = vunpack.c.h.b16 %v361
      %v371 = vunpack.c.h.b16 %v362
      %v372 = vpack.c.b16 %v367, %v366
      %v373 = vpack.c.b16 %v368, %v368
      %v374 = vpack.c.b16 %v370, %v369
      %v375 = vpack.c.b16 %v371, %v371
      %380 = vst [vmem:[#allocation8] sm:$0xff] %v372
      %381 = vst [vmem:[#allocation8 + $0x8] sm:$0xf] %v373
      %382 = vst [vmem:[#allocation8 + $0xc] sm:$0xff] %v374
      %383 = vst [vmem:[#allocation8 + $0x14] sm:$0xf] %v375
    $region33: #{tpu_custom_call.1} parent=1 // pred_fallthru
      _
    // Predicated region
    $region34: #{tpu_custom_call.1} parent=1 // pred_check
      _
    $region35: #{tpu_custom_call.1} parent=1 // pred_check_branch
      %385 = sbr.rel (0) target = $region37
    $region36: #{tpu_custom_call.1} parent=1 // pred_region
      %s387 = ssub.s32 384, 384
      %388 = vsyncadd [#allocation5], %s387
      %s389 = sshll.u32 [#allocation8], 4
      %s390 = int_to_ptr.vmem [resolvable:$true] %s389
      %395 = dma.vmem_to_hbm [thread:$0]  %s390, 384, %s3, [#allocation5], 192, 192, 12
    $region37: #{tpu_custom_call.1} parent=1 // pred_fallthru
      _
    // Predicated region
    $region38: #{tpu_custom_call.1} parent=1 // pred_check
      _
    $region39: #{tpu_custom_call.1} parent=1 // pred_check_branch
      %397 = sbr.rel (0) target = $region41
    $region40: #{tpu_custom_call.1} parent=1 // pred_region
      %398 = dma.done [#allocation5], 384
    $region41: #{tpu_custom_call.1} parent=1 // pred_fallthru
      _
    %399 = vsyncpa [#allocation4], 1
    %400 = vsyncpa [#allocation7], 1
    %401 = vsyncpa [#allocation5], 1

</llo_original>
